<compile_context>
chip_gen: v7x
topology: tpu7x:2x2x1
jax: 0.10.0
libtpu: 0.0.40
codegen_flags: <defaults>
</compile_context>

<pallas_src>
import functools

import jax
import jax.numpy as jnp
import numpy as np
from jax.experimental import pallas as pl
from jax.experimental.pallas import tpu as pltpu


def _round_up(x, m):
    return ((x + m - 1) // m) * m


def _vmem_capacity_bytes():
    """Generation-aware VMEM capacity (v5e/v6e: 128 MiB, v7x: 64 MiB per TensorCore)."""
    try:
        info = pltpu.get_tpu_info()
        cap = getattr(info, "vmem_capacity_bytes", None)
        if cap:
            return int(cap)
    except Exception:
        pass
    return 64 * 1024 * 1024  # conservative fallback = v7x per-TC figure


def _pick_dst_tile(n_dst, n_src, e_dim, slab_budget):
    """Largest dst tile whose bf16 edge-attr slab fits the per-buffer VMEM budget."""
    row_bytes = max(n_src * e_dim * 2, 1)          # bf16 edge attrs for one dst row
    t = 8
    for cand in (1024, 512, 256, 128, 64, 32, 16, 8):
        if cand * row_bytes <= slab_budget:
            t = cand
            break
    # TODO(synk): if even t=8 exceeds the budget (enormous N_src), an N_src grid axis
    #             with an online softmax is required; not needed at these shapes.
    return min(t, _round_up(n_dst, 8))


# --------------------------------------------------------------------------------------
# Kernel 1: node projections, tiled over node rows.
# --------------------------------------------------------------------------------------
def _gat_proj_kernel(x_ref, wfc_ref, weh_ref, wet_ref, feat_ref, eh_ref, et_ref):
    x = x_ref[...]                                     # (T, F_in) f32
    xb = x.astype(jnp.bfloat16)
    num_heads = feat_ref.shape[0]
    for h in range(num_heads):                         # head-major feat: free views later
        feat_ref[h] = jnp.dot(xb, wfc_ref[h],
                              preferred_element_type=jnp.float32).astype(jnp.bfloat16)
    # attention-logit projections stay f32 (softmax sensitivity); H is tiny.
    eh_ref[...] = jnp.dot(x, weh_ref[...], preferred_element_type=jnp.float32)  # (T, H)
    et_ref[...] = jnp.dot(x, wet_ref[...], preferred_element_type=jnp.float32)  # (T, H)


# --------------------------------------------------------------------------------------
# Kernel 2: per-dst-tile edge scores, edge softmax and aggregation.
# --------------------------------------------------------------------------------------
def _gat_attn_kernel(eattr_ref, mb_ref, feat_ref, eh_ref, et_ref, wae_ref, bias_ref,
                     out_ref, *, negative_slope, apply_relu):
    num_heads = feat_ref.shape[0]
    e_dim = eattr_ref.shape[0]

    mb = mb_ref[...].astype(jnp.float32)               # (T, N_src) additive adjacency mask
    et = et_ref[...]                                   # (T, H) f32

    outs = []
    for h in range(num_heads):
        # ee[t, n] = sum_e w_ae[h, e] * edge_attr[e, t, n] -- unrolled VPU FMA chain
        # (bf16 channel tiles are free leading-axis views, f32 accumulation).
        ee = wae_ref[h, 0] * eattr_ref[0]
        for e in range(1, e_dim):
            ee = ee + wae_ref[h, e] * eattr_ref[e]

        s = ee + eh_ref[h:h + 1, :] + et[:, h:h + 1]   # (T, N_src) f32
        s = jnp.where(s > 0, s, negative_slope * s)    # leaky relu
        s = s + mb                                     # 0 on edges, -1e30 otherwise

        # edge softmax over incoming edges (src axis); normalization deferred to EUP.
        # NOTE: a dst node with zero in-edges would softmax over masked scores here
        # (reference / DGL gives NaN or raises); the demo graph always has self-loops.
        m = jnp.max(s, axis=-1, keepdims=True)         # (T, 1)
        p = jnp.exp(s - m)                             # non-edges -> exactly 0
        inv = pl.reciprocal(jnp.sum(p, axis=-1, keepdims=True), approx=True)

        o_h = jnp.dot(p.astype(jnp.bfloat16), feat_ref[h],
                      preferred_element_type=jnp.float32)   # (T, D) on the MXU
        outs.append(o_h * inv)

    out = jnp.concatenate(outs, axis=-1) + bias_ref[...]    # (T, H*D), single dense store
    if apply_relu:
        out = jnp.maximum(out, 0.0)
    out_ref[...] = out


# --------------------------------------------------------------------------------------
# One GATConv layer (concat_out=True, residual=False, norm=None, dropout=0).
# --------------------------------------------------------------------------------------
def gat_conv_layer(x, eattr_t, mask_bias, params, *, num_heads, out_feats,
                   n_nodes, n_pad, dst_tile, vmem_limit,
                   negative_slope=0.2, apply_relu=False):
    """eattr_t   : (E, n_pad, n_pad) bf16  -- edge attrs, source axis last (lane-dense)
       mask_bias : (n_pad, n_pad)    bf16  -- 0 on edges, -1e30 elsewhere (additive)."""
    f_in = x.shape[1]
    H, D = num_heads, out_feats
    hd = H * D
    e_dim = eattr_t.shape[0]
    t = dst_tile
    grid = (n_pad // t,)

    # Fold the per-head attention vectors into the linear weights (exact algebra):
    #   eh = ((x @ w_fc).reshape(N,H,D) * attn_h).sum(-1) == x @ w_eh, etc.
    ah = params["attn_h"].reshape(H, D)
    at = params["attn_t"].reshape(H, D)
    ae = params["attn_e"].reshape(H, D)
    wfc3 = params["w_fc"].reshape(f_in, H, D)
    w_eh = jnp.einsum("fhd,hd->fh", wfc3, ah)                                   # (F_in, H)
    w_et = jnp.einsum("fhd,hd->fh", wfc3, at)                                   # (F_in, H)
    w_ae = jnp.einsum("ehd,hd->he", params["w_edge"].reshape(e_dim, H, D), ae)  # (H, E)
    wfc_heads = jnp.transpose(wfc3, (1, 0, 2)).astype(jnp.bfloat16)             # (H, F_in, D)
    bias = params["bias"].reshape(1, hd)

    if n_pad > n_nodes:
        x = jnp.pad(x, ((0, n_pad - n_nodes), (0, 0)))     # padded rows are zeros

    # ---- kernel 1: node projections ----
    feat, eh_nh, et_nh = pl.pallas_call(
        _gat_proj_kernel,
        out_shape=(jax.ShapeDtypeStruct((H, n_pad, D), jnp.bfloat16),
                   jax.ShapeDtypeStruct((n_pad, H), jnp.float32),
                   jax.ShapeDtypeStruct((n_pad, H), jnp.float32)),
        grid=grid,
        in_specs=[
            pl.BlockSpec((t, f_in), lambda i: (i, 0)),
            pl.BlockSpec((H, f_in, D), lambda i: (0, 0, 0)),
            pl.BlockSpec((f_in, H), lambda i: (0, 0)),
            pl.BlockSpec((f_in, H), lambda i: (0, 0)),
        ],
        out_specs=(
            pl.BlockSpec((H, t, D), lambda i: (0, i, 0)),
            pl.BlockSpec((t, H), lambda i: (i, 0)),
            pl.BlockSpec((t, H), lambda i: (i, 0)),
        ),
        compiler_params=pltpu.CompilerParams(
            dimension_semantics=("parallel",), vmem_limit_bytes=vmem_limit),
    )(x, wfc_heads, w_eh, w_et)
    eh_hn = eh_nh.T                    # (H, n_pad): tiny layout glue between kernels

    # ---- kernel 2: attention + aggregation over dst tiles ----
    # TODO(synk): constant-index inputs (feat/eh/w_ae/bias) could use
    #             pipeline_mode=pl.Buffered(1) to drop their second pipeline buffer;
    #             left at the default for lowering robustness.
    kernel = functools.partial(_gat_attn_kernel, negative_slope=negative_slope,
                               apply_relu=apply_relu)
    out = pl.pallas_call(
        kernel,
        out_shape=jax.ShapeDtypeStruct((n_pad, hd), jnp.float32),
        grid=grid,
        in_specs=[
            pl.BlockSpec((e_dim, t, n_pad), lambda i: (0, i, 0)),   # edge attrs (bf16)
            pl.BlockSpec((t, n_pad), lambda i: (i, 0)),             # additive adj mask
            pl.BlockSpec((H, n_pad, D), lambda i: (0, 0, 0)),       # per-head feat (bf16)
            pl.BlockSpec((H, n_pad), lambda i: (0, 0)),             # eh (src logits)
            pl.BlockSpec((t, H), lambda i: (i, 0)),                 # et (dst logits)
            pl.BlockSpec(memory_space=pltpu.MemorySpace.SMEM),      # folded edge weights
            pl.BlockSpec((1, hd), lambda i: (0, 0)),                # bias
        ],
        out_specs=pl.BlockSpec((t, hd), lambda i: (i, 0)),
        compiler_params=pltpu.CompilerParams(
            dimension_semantics=("parallel",),   # dst tiles shard across v7x's 2 TCs
            vmem_limit_bytes=vmem_limit),
    )(eattr_t, mask_bias, feat, eh_hn, et_nh, w_ae, bias)
    return out[:n_nodes]


# ---------------- parameter init (deterministic, matches module shapes) ----------------

def _xavier_normal(key, shape, fan_in, fan_out, gain):
    std = gain * np.sqrt(2.0 / (fan_in + fan_out))
    return (std * jax.random.normal(key, shape)).astype(jnp.float32)


def init_gat_conv_params(key, in_dim, e_dim, out_feats, num_heads):
    gain = float(np.sqrt(2.0))                 # nn.init.calculate_gain('relu')
    hd = out_feats * num_heads
    k = jax.random.split(key, 5)
    return {
        # torch fc.weight is (H*D, in_dim); we store the transpose (in_dim, H*D)
        "w_fc":   _xavier_normal(k[0], (in_dim, hd), in_dim, hd, gain),
        "w_edge": _xavier_normal(k[1], (e_dim, hd), e_dim, hd, gain),
        # attn_* are (1, H, D) in torch; stored as (H, 1, D)
        "attn_h": _xavier_normal(k[2], (num_heads, 1, out_feats), num_heads * out_feats, out_feats, gain),
        "attn_t": _xavier_normal(k[3], (num_heads, 1, out_feats), num_heads * out_feats, out_feats, gain),
        "attn_e": _xavier_normal(k[4], (num_heads, 1, out_feats), num_heads * out_feats, out_feats, gain),
        "bias":   jnp.zeros((num_heads, 1, out_feats), jnp.float32),
    }


# ---------------- pure-JAX reference (same dense-graph semantics, f32) ----------------

def gat_conv_ref(x, edge_attr, adj, params, *, num_heads, out_feats,
                 negative_slope=0.2, apply_relu=False):
    n = x.shape[0]
    H, D = num_heads, out_feats
    feat = (x @ params["w_fc"]).reshape(n, H, D)
    fe = jnp.einsum("vue,ed->vud", edge_attr, params["w_edge"]).reshape(n, n, H, D)
    ah = params["attn_h"].reshape(H, D)
    at = params["attn_t"].reshape(H, D)
    ae = params["attn_e"].reshape(H, D)
    eh = jnp.sum(feat * ah, -1)                      # (N_src, H)
    et = jnp.sum(feat * at, -1)                      # (N_dst, H)
    ee = jnp.sum(fe * ae, -1)                        # (N_dst, N_src, H)
    s = ee + et[:, None, :] + eh[None, :, :]
    s = jnp.where(s > 0, s, negative_slope * s)
    masked = jnp.where(adj[:, :, None] > 0, s, -1e30)
    p = jnp.exp(masked - masked.max(axis=1, keepdims=True)) * adj[:, :, None]
    a = p / p.sum(axis=1, keepdims=True)
    out = jnp.einsum("vuh,uhd->vhd", a, feat) + params["bias"].reshape(1, H, D)
    out = out.reshape(n, H * D)
    if apply_relu:
        out = jnp.maximum(out, 0.0)
    return out


# ---------------- GAT (stack of GATConv layers) ----------------

def build_gat(key, n_dim, e_dim, num_hidden, out_dim, num_layers, nhead, nhead_out):
    # hidden layers use `nhead` heads + relu activation; last layer uses nhead_out, no act.
    cfgs = []
    if num_layers == 1:
        cfgs.append((n_dim, out_dim, nhead_out, False))
    else:
        cfgs.append((n_dim, num_hidden, nhead, True))
        for _ in range(1, num_layers - 1):
            cfgs.append((num_hidden * nhead, num_hidden, nhead, True))
        cfgs.append((num_hidden * nhead, out_dim, nhead_out, False))
    keys = jax.random.split(key, len(cfgs))
    layers = []
    for k_l, (fin, fo, heads, act) in zip(keys, cfgs):
        layers.append((init_gat_conv_params(k_l, fin, e_dim, fo, heads), fo, heads, act))
    return layers


def gat_forward(layers, x, edge_attr, adj, negative_slope=0.2):
    n = x.shape[0]
    e_dim = edge_attr.shape[-1]

    # Generation-aware VMEM budgets (128 MiB on v5e/v6e, 64 MiB per-TC on v7x).
    cap = _vmem_capacity_bytes()
    slab_budget = max(cap // 8, 2 * 1024 * 1024)
    vmem_limit = max(min(int(cap * 0.72), 100 * 1024 * 1024), 32 * 1024 * 1024)
    t = _pick_dst_tile(n, n, e_dim, slab_budget)
    n_pad = _round_up(n, t)

    # Shared across every layer: edge attrs with the source axis last (lane-dense),
    # cast to bf16 once (halves the dominant HBM stream), and the hoisted additive
    # adjacency mask.  Both padded once to the dst-tile multiple; padded src columns
    # are fully masked, padded dst rows are sliced off the output.
    eattr_t = jnp.transpose(edge_attr, (2, 0, 1)).astype(jnp.bfloat16)   # (E, N, N)
    adj_p = adj
    if n_pad > n:
        pad = n_pad - n
        eattr_t = jnp.pad(eattr_t, ((0, 0), (0, pad), (0, pad)))
        adj_p = jnp.pad(adj, ((0, pad), (0, pad)))
    mask_bias = ((adj_p - 1.0) * 1e30).astype(jnp.bfloat16)              # 0 / -1e30

    h = x
    for params, fo, heads, act in layers:
        h = gat_conv_layer(h, eattr_t, mask_bias, params, num_heads=heads, out_feats=fo,
                           n_nodes=n, n_pad=n_pad, dst_tile=t, vmem_limit=vmem_limit,
                           negative_slope=negative_slope, apply_relu=act)
    return h


def gat_forward_ref(layers, x, edge_attr, adj, negative_slope=0.2):
    h = x
    for params, fo, heads, act in layers:
        h = gat_conv_ref(h, edge_attr, adj, params, num_heads=heads, out_feats=fo,
                         negative_slope=negative_slope, apply_relu=act)
    return h


# TODO(synk): feat_drop / attn_drop are identity (p=0, eval mode); residual=False and
#             norm=None in this config, so they are not emitted (get_attention path too).
# TODO(synk): for graphs where even a t=8 dst tile over the full N_src exceeds VMEM,
#             add an N_src grid axis with an online softmax (flash-attention style).

if __name__ == "__main__":
    key = jax.random.PRNGKey(0)
    N, n_dim, e_dim = 8, 16, 8
    num_hidden, out_dim = 16, 8
    num_layers, nhead, nhead_out = 2, 4, 2
    negative_slope = 0.2

    kx, ke, kp = jax.random.split(key, 3)
    x = jax.random.normal(kx, (N, n_dim), dtype=jnp.float32)
    edge_attr = jax.random.normal(ke, (N, N, e_dim), dtype=jnp.float32)

    # deterministic sparse graph (dst-major adjacency): self-loop + 2 ring neighbors
    adj_np = np.zeros((N, N), np.float32)
    for v in range(N):
        for u in (v, (v + 1) % N, (v + 3) % N):
            adj_np[v, u] = 1.0
    adj = jnp.asarray(adj_np)

    layers = build_gat(kp, n_dim, e_dim, num_hidden, out_dim, num_layers, nhead, nhead_out)

    out = gat_forward(layers, x, edge_attr, adj, negative_slope)
    out = jax.block_until_ready(out)

    ref = gat_forward_ref(layers, x, edge_attr, adj, negative_slope)
    # bf16 edge-attr / feature streams + approx reciprocal across 2 stacked layers
    # => slightly looser tolerance than pure f32.
    np.testing.assert_allclose(np.asarray(out), np.asarray(ref), rtol=4e-2, atol=4e-2)
    assert out.shape == (N, out_dim * nhead_out)
    print("KERNEL_OK")
</pallas_src>

<mosaic_0001>
module attributes {stable_mosaic.version = 11 : i64} {
  func.func @_gat_proj_kernel(%arg0: i32, %arg1: memref<8x16xf32, #tpu.memory_space<vmem>>, %arg2: memref<4x16x16xbf16, #tpu.memory_space<vmem>>, %arg3: memref<16x4xf32, #tpu.memory_space<vmem>>, %arg4: memref<16x4xf32, #tpu.memory_space<vmem>>, %arg5: memref<4x8x16xbf16, #tpu.memory_space<vmem>>, %arg6: memref<8x4xf32, #tpu.memory_space<vmem>>, %arg7: memref<8x4xf32, #tpu.memory_space<vmem>>) attributes {dimension_semantics = [#tpu.dimension_semantics<parallel>], iteration_bounds = array<i64: 1>, scalar_prefetch = 0 : i64, scratch_operands = 0 : i64, tpu.core_type = #tpu.core_type<tc>, window_params = [{transform_indices = @transform_0, window_bounds = array<i64: 8, 16>}, {pipeline_mode = #tpu.pipeline_mode<synchronous>, transform_indices = @transform_1, window_bounds = array<i64: 4, 16, 16>}, {pipeline_mode = #tpu.pipeline_mode<synchronous>, transform_indices = @transform_2, window_bounds = array<i64: 16, 4>}, {pipeline_mode = #tpu.pipeline_mode<synchronous>, transform_indices = @transform_3, window_bounds = array<i64: 16, 4>}, {transform_indices = @transform_4, window_bounds = array<i64: 4, 8, 16>}, {transform_indices = @transform_5, window_bounds = array<i64: 8, 4>}, {transform_indices = @transform_6, window_bounds = array<i64: 8, 4>}]} {
    %c0 = arith.constant 0 : index
    %c0_0 = arith.constant 0 : index
    %0 = vector.load %arg1[%c0, %c0_0] : memref<8x16xf32, #tpu.memory_space<vmem>>, vector<8x16xf32>
    %1 = arith.truncf %0 : vector<8x16xf32> to vector<8x16xbf16>
    %c0_1 = arith.constant 0 : index
    %c0_2 = arith.constant 0 : index
    %c0_3 = arith.constant 0 : index
    %2 = vector.load %arg2[%c0_1, %c0_2, %c0_3] : memref<4x16x16xbf16, #tpu.memory_space<vmem>>, vector<1x16x16xbf16>
    %3 = vector.shape_cast %2 : vector<1x16x16xbf16> to vector<16x16xbf16>
    %cst = arith.constant dense<0.000000e+00> : vector<8x16xf32>
    %4 = tpu.matmul %1, %3, %cst {dimension_numbers = #tpu.dot_dimension_numbers<[1], [0], [0], [1], [0, 0, 1, 1], [], []>} : vector<8x16xbf16>, vector<16x16xbf16>, vector<8x16xf32> -> vector<8x16xf32>
    %5 = arith.truncf %4 : vector<8x16xf32> to vector<8x16xbf16>
    %c0_4 = arith.constant 0 : index
    %c0_5 = arith.constant 0 : index
    %c0_6 = arith.constant 0 : index
    %6 = vector.load %arg5[%c0_4, %c0_5, %c0_6] : memref<4x8x16xbf16, #tpu.memory_space<vmem>>, vector<1x8x16xbf16>
    %7 = vector.shape_cast %6 : vector<1x8x16xbf16> to vector<8x16xbf16>
    %8 = vector.shape_cast %5 : vector<8x16xbf16> to vector<1x8x16xbf16>
    tpu.vector_store %arg5[%c0_4, %c0_5, %c0_6], %8 {strides = array<i32>} : memref<4x8x16xbf16, #tpu.memory_space<vmem>>, vector<1x8x16xbf16>,
    %c1 = arith.constant 1 : index
    %c0_7 = arith.constant 0 : index
    %c0_8 = arith.constant 0 : index
    %9 = vector.load %arg2[%c1, %c0_7, %c0_8] : memref<4x16x16xbf16, #tpu.memory_space<vmem>>, vector<1x16x16xbf16>
    %10 = vector.shape_cast %9 : vector<1x16x16xbf16> to vector<16x16xbf16>
    %cst_9 = arith.constant dense<0.000000e+00> : vector<8x16xf32>
    %11 = tpu.matmul %1, %10, %cst_9 {dimension_numbers = #tpu.dot_dimension_numbers<[1], [0], [0], [1], [0, 0, 1, 1], [], []>} : vector<8x16xbf16>, vector<16x16xbf16>, vector<8x16xf32> -> vector<8x16xf32>
    %12 = arith.truncf %11 : vector<8x16xf32> to vector<8x16xbf16>
    %c1_10 = arith.constant 1 : index
    %c0_11 = arith.constant 0 : index
    %c0_12 = arith.constant 0 : index
    %13 = vector.load %arg5[%c1_10, %c0_11, %c0_12] : memref<4x8x16xbf16, #tpu.memory_space<vmem>>, vector<1x8x16xbf16>
    %14 = vector.shape_cast %13 : vector<1x8x16xbf16> to vector<8x16xbf16>
    %15 = vector.shape_cast %12 : vector<8x16xbf16> to vector<1x8x16xbf16>
    tpu.vector_store %arg5[%c1_10, %c0_11, %c0_12], %15 {strides = array<i32>} : memref<4x8x16xbf16, #tpu.memory_space<vmem>>, vector<1x8x16xbf16>,
    %c2 = arith.constant 2 : index
    %c0_13 = arith.constant 0 : index
    %c0_14 = arith.constant 0 : index
    %16 = vector.load %arg2[%c2, %c0_13, %c0_14] : memref<4x16x16xbf16, #tpu.memory_space<vmem>>, vector<1x16x16xbf16>
    %17 = vector.shape_cast %16 : vector<1x16x16xbf16> to vector<16x16xbf16>
    %cst_15 = arith.constant dense<0.000000e+00> : vector<8x16xf32>
    %18 = tpu.matmul %1, %17, %cst_15 {dimension_numbers = #tpu.dot_dimension_numbers<[1], [0], [0], [1], [0, 0, 1, 1], [], []>} : vector<8x16xbf16>, vector<16x16xbf16>, vector<8x16xf32> -> vector<8x16xf32>
    %19 = arith.truncf %18 : vector<8x16xf32> to vector<8x16xbf16>
    %c2_16 = arith.constant 2 : index
    %c0_17 = arith.constant 0 : index
    %c0_18 = arith.constant 0 : index
    %20 = vector.load %arg5[%c2_16, %c0_17, %c0_18] : memref<4x8x16xbf16, #tpu.memory_space<vmem>>, vector<1x8x16xbf16>
    %21 = vector.shape_cast %20 : vector<1x8x16xbf16> to vector<8x16xbf16>
    %22 = vector.shape_cast %19 : vector<8x16xbf16> to vector<1x8x16xbf16>
    tpu.vector_store %arg5[%c2_16, %c0_17, %c0_18], %22 {strides = array<i32>} : memref<4x8x16xbf16, #tpu.memory_space<vmem>>, vector<1x8x16xbf16>,
    %c3 = arith.constant 3 : index
    %c0_19 = arith.constant 0 : index
    %c0_20 = arith.constant 0 : index
    %23 = vector.load %arg2[%c3, %c0_19, %c0_20] : memref<4x16x16xbf16, #tpu.memory_space<vmem>>, vector<1x16x16xbf16>
    %24 = vector.shape_cast %23 : vector<1x16x16xbf16> to vector<16x16xbf16>
    %cst_21 = arith.constant dense<0.000000e+00> : vector<8x16xf32>
    %25 = tpu.matmul %1, %24, %cst_21 {dimension_numbers = #tpu.dot_dimension_numbers<[1], [0], [0], [1], [0, 0, 1, 1], [], []>} : vector<8x16xbf16>, vector<16x16xbf16>, vector<8x16xf32> -> vector<8x16xf32>
    %26 = arith.truncf %25 : vector<8x16xf32> to vector<8x16xbf16>
    %c3_22 = arith.constant 3 : index
    %c0_23 = arith.constant 0 : index
    %c0_24 = arith.constant 0 : index
    %27 = vector.load %arg5[%c3_22, %c0_23, %c0_24] : memref<4x8x16xbf16, #tpu.memory_space<vmem>>, vector<1x8x16xbf16>
    %28 = vector.shape_cast %27 : vector<1x8x16xbf16> to vector<8x16xbf16>
    %29 = vector.shape_cast %26 : vector<8x16xbf16> to vector<1x8x16xbf16>
    tpu.vector_store %arg5[%c3_22, %c0_23, %c0_24], %29 {strides = array<i32>} : memref<4x8x16xbf16, #tpu.memory_space<vmem>>, vector<1x8x16xbf16>,
    %c0_25 = arith.constant 0 : index
    %c0_26 = arith.constant 0 : index
    %30 = vector.load %arg3[%c0_25, %c0_26] : memref<16x4xf32, #tpu.memory_space<vmem>>, vector<16x4xf32>
    %cst_27 = arith.constant dense<0.000000e+00> : vector<8x4xf32>
    %31 = tpu.matmul %0, %30, %cst_27 {dimension_numbers = #tpu.dot_dimension_numbers<[1], [0], [0], [1], [0, 0, 1, 1], [], []>} : vector<8x16xf32>, vector<16x4xf32>, vector<8x4xf32> -> vector<8x4xf32>
    %c0_28 = arith.constant 0 : index
    %c0_29 = arith.constant 0 : index
    %32 = vector.load %arg6[%c0_28, %c0_29] : memref<8x4xf32, #tpu.memory_space<vmem>>, vector<8x4xf32>
    tpu.vector_store %arg6[%c0_28, %c0_29], %31 {strides = array<i32>} : memref<8x4xf32, #tpu.memory_space<vmem>>, vector<8x4xf32>,
    %c0_30 = arith.constant 0 : index
    %c0_31 = arith.constant 0 : index
    %33 = vector.load %arg4[%c0_30, %c0_31] : memref<16x4xf32, #tpu.memory_space<vmem>>, vector<16x4xf32>
    %cst_32 = arith.constant dense<0.000000e+00> : vector<8x4xf32>
    %34 = tpu.matmul %0, %33, %cst_32 {dimension_numbers = #tpu.dot_dimension_numbers<[1], [0], [0], [1], [0, 0, 1, 1], [], []>} : vector<8x16xf32>, vector<16x4xf32>, vector<8x4xf32> -> vector<8x4xf32>
    %c0_33 = arith.constant 0 : index
    %c0_34 = arith.constant 0 : index
    %35 = vector.load %arg7[%c0_33, %c0_34] : memref<8x4xf32, #tpu.memory_space<vmem>>, vector<8x4xf32>
    tpu.vector_store %arg7[%c0_33, %c0_34], %34 {strides = array<i32>} : memref<8x4xf32, #tpu.memory_space<vmem>>, vector<8x4xf32>,
    return
  }
  func.func @transform_0(%arg0: i32) -> (i32, i32) {
    %c0_i32 = arith.constant 0 : i32
    %c0_i32_0 = arith.constant 0 : i32
    return %arg0, %c0_i32 : i32, i32
  }
  func.func @transform_1(%arg0: i32) -> (i32, i32, i32) {
    %c0_i32 = arith.constant 0 : i32
    %c0_i32_0 = arith.constant 0 : i32
    %c0_i32_1 = arith.constant 0 : i32
    %c0_i32_2 = arith.constant 0 : i32
    return %c0_i32, %c0_i32_0, %c0_i32_1 : i32, i32, i32
  }
  func.func @transform_2(%arg0: i32) -> (i32, i32) {
    %c0_i32 = arith.constant 0 : i32
    %c0_i32_0 = arith.constant 0 : i32
    %c0_i32_1 = arith.constant 0 : i32
    return %c0_i32, %c0_i32_0 : i32, i32
  }
  func.func @transform_3(%arg0: i32) -> (i32, i32) {
    %c0_i32 = arith.constant 0 : i32
    %c0_i32_0 = arith.constant 0 : i32
    %c0_i32_1 = arith.constant 0 : i32
    return %c0_i32, %c0_i32_0 : i32, i32
  }
  func.func @transform_4(%arg0: i32) -> (i32, i32, i32) {
    %c0_i32 = arith.constant 0 : i32
    %c0_i32_0 = arith.constant 0 : i32
    %c0_i32_1 = arith.constant 0 : i32
    return %c0_i32, %arg0, %c0_i32_0 : i32, i32, i32
  }
  func.func @transform_5(%arg0: i32) -> (i32, i32) {
    %c0_i32 = arith.constant 0 : i32
    %c0_i32_0 = arith.constant 0 : i32
    return %arg0, %c0_i32 : i32, i32
  }
  func.func @transform_6(%arg0: i32) -> (i32, i32) {
    %c0_i32 = arith.constant 0 : i32
    %c0_i32_0 = arith.constant 0 : i32
    return %arg0, %c0_i32 : i32, i32
  }
}

</mosaic_0001>

<llo_original>
// kernel: tpu_custom_call.1
$region0: #{tpu_custom_call.1}
  #allocation0 [shape = 'u32[]', space=smem, size = 0x4, offset = 0x4, fixed_abs, tag = 'smem constant byte address 0x4 - core index']
  #allocation1 [shape = 'u32[144,128]{1,0:T(1,128)}', space=vmem, size = 0x12000, scoped, tag = 'internal scratch']
  %s0 = inlined_call_operand.vmem [shape: f32[8,16], index: 0, kind: input, shape index: {}]
  %s1 = inlined_call_operand.vmem [shape: bf16[4,16,16], index: 1, kind: input, shape index: {}]
  %s2 = inlined_call_operand.vmem [shape: f32[16,4], index: 2, kind: input, shape index: {}]
  %s3 = inlined_call_operand.vmem [shape: f32[16,4], index: 3, kind: input, shape index: {}]
  %s4 = inlined_call_operand.hbm [shape: bf16[4,8,16], index: 4, kind: output, shape index: {0}]
  %s5 = inlined_call_operand.vmem [shape: f32[8,4], index: 5, kind: output, shape index: {1}]
  %s6 = inlined_call_operand.vmem [shape: f32[8,4], index: 6, kind: output, shape index: {2}]
  %7 = xla_tuple %s4, %s5, %s6
  %s8 = sld [smem:[#allocation0]]
  $region42: #{tpu_custom_call.1} parent=0
    _
  %s10 = ssub.s32 1, %s8
  %s11 = scalar_select 0, %s10, %s8
  $region1: #{tpu_custom_call.1} parent=0
    #allocation2 [shape = 'u8[8192]{0}', space=vmem, size = 0x2000, scoped, tag = 'output window, operand 0, single buffered']
    #allocation3 [shape = 's32[1]{0}', space=sflag, size = 0x4, scoped, tag = 'scoped memory for tpu_custom_call.1']
    %12 = vsyncpa [#allocation3], 0
    // Predicated region
    $region2: #{tpu_custom_call.1} parent=1 // pred_check
      _
    $region3: #{tpu_custom_call.1} parent=1 // pred_check_branch
      %14 = sbr.rel (0) target = $region5
    $region4: #{tpu_custom_call.1} parent=1 // pred_region
      _
    $region5: #{tpu_custom_call.1} parent=1 // pred_fallthru
      _
    // Predicated region
    $region6: #{tpu_custom_call.1} parent=1 // pred_check
      _
    $region7: #{tpu_custom_call.1} parent=1 // pred_check_branch
      %16 = sbr.rel (0) target = $region9
    $region8: #{tpu_custom_call.1} parent=1 // pred_region
      _
    $region9: #{tpu_custom_call.1} parent=1 // pred_fallthru
      _
    // Predicated region
    $region10: #{tpu_custom_call.1} parent=1 // pred_check
      _
    $region11: #{tpu_custom_call.1} parent=1 // pred_check_branch
      %18 = sbr.rel (0) target = $region13
    $region12: #{tpu_custom_call.1} parent=1 // pred_region
      _
    $region13: #{tpu_custom_call.1} parent=1 // pred_fallthru
      _
    // Predicated region
    $region14: #{tpu_custom_call.1} parent=1 // pred_check
      _
    $region15: #{tpu_custom_call.1} parent=1 // pred_check_branch
      %20 = sbr.rel (0) target = $region17
    $region16: #{tpu_custom_call.1} parent=1 // pred_region
      _
    $region17: #{tpu_custom_call.1} parent=1 // pred_fallthru
      _
    %v22 = vld [vmem:[%s0] sm:$0xff]
    %v23 = vpack.c.bf16 %v22, %v22
    %v24 = vld [vmem:[%s1] sm:$0xf]
    %v25 = vld [vmem:[%s1 + $0x4] sm:$0xf]
    %v28 = vunpack.c.l.b16 %v24
    %v29 = vunpack.c.l.b16 %v25
    %v30 = vpack.c.b16 %v29, %v28
    %vm32 = vcmask 130048
    %v34 = vsel %vm32, %v23, 0
    %36 = vmatprep.subr.bf16.mxu0 0
    %37 = vmatpush1.bf16.msra.mxu0 %v30
    %38 = vmatprep.subr.bf16.mxu0 0
    %39 = vmatpush1.bf16.msra.mxu0 0
    %40 = vmatprep.subr.bf16.mxu0 0
    %41 = vmatpush1.bf16.msra.mxu0 0
    %42 = vmatprep.subr.bf16.mxu0 0
    %43 = vmatpush1.bf16.msra.mxu0 0
    %44 = vmatprep.subr.bf16.mxu0 0
    %45 = vmatpush1.bf16.msra.mxu0 0
    %46 = vmatprep.subr.bf16.mxu0 0
    %47 = vmatpush1.bf16.msra.mxu0 0
    %48 = vmatprep.subr.bf16.mxu0 0
    %49 = vmatpush1.bf16.msra.mxu0 0
    %50 = vmatprep.subr.bf16.mxu0 0
    %51 = vmatpush1.bf16.msra.mxu0 0
    %52 = vmatprep.subr.bf16.mxu0 0
    %53 = vmatpush1.bf16.msra.mxu0 0
    %54 = vmatprep.subr.bf16.mxu0 0
    %55 = vmatpush1.bf16.msra.mxu0 0
    %56 = vmatprep.subr.bf16.mxu0 0
    %57 = vmatpush1.bf16.msra.mxu0 0
    %58 = vmatprep.subr.bf16.mxu0 0
    %59 = vmatpush1.bf16.msra.mxu0 0
    %60 = vmatprep.subr.bf16.mxu0 0
    %61 = vmatpush1.bf16.msra.mxu0 0
    %62 = vmatprep.subr.bf16.mxu0 0
    %63 = vmatpush1.bf16.msra.mxu0 0
    %64 = vmatprep.subr.bf16.mxu0 0
    %65 = vmatpush1.bf16.msra.mxu0 0
    %66 = vmatprep.subr.bf16.mxu0 0
    %67 = vmatpush1.bf16.msra.mxu0 0
    %68 = vmatprep.mubr.bf16.mxu0 0
    %69 = vmatmul.mubr.bf16.gmra.mrb[0].mxu0 %v34
    %v70 = vpop.f32.mrb[0].mxu0
    %v71 = vadd.f32 0.0, %v70
    %v72 = vpop.f32.mrb[0].mxu0
    %v73 = vpop.f32.mrb[0].mxu0
    %v74 = vpop.f32.mrb[0].mxu0
    %75 = vdwg.mxu0
    %v76 = vpack.c.bf16 %v71, %v71
    %vm77 = vcmask 125952
    %78 = vst.msk [vmem:[#allocation2] sm:$0xf] %vm77, %v76
    %s79 = scalar_lea.vmem %s1, 8
    %v80 = vld [vmem:[%s79] sm:$0xf]
    %v81 = vld [vmem:[%s79 + $0x4] sm:$0xf]
    %v84 = vunpack.c.l.b16 %v80
    %v85 = vunpack.c.l.b16 %v81
    %v86 = vpack.c.b16 %v85, %v84
    %88 = vmatprep.subr.bf16.mxu0 0
    %89 = vmatpush1.bf16.msra.mxu0 %v86
    %90 = vmatprep.subr.bf16.mxu0 0
    %91 = vmatpush1.bf16.msra.mxu0 0
    %92 = vmatprep.subr.bf16.mxu0 0
    %93 = vmatpush1.bf16.msra.mxu0 0
    %94 = vmatprep.subr.bf16.mxu0 0
    %95 = vmatpush1.bf16.msra.mxu0 0
    %96 = vmatprep.subr.bf16.mxu0 0
    %97 = vmatpush1.bf16.msra.mxu0 0
    %98 = vmatprep.subr.bf16.mxu0 0
    %99 = vmatpush1.bf16.msra.mxu0 0
    %100 = vmatprep.subr.bf16.mxu0 0
    %101 = vmatpush1.bf16.msra.mxu0 0
    %102 = vmatprep.subr.bf16.mxu0 0
    %103 = vmatpush1.bf16.msra.mxu0 0
    %104 = vmatprep.subr.bf16.mxu0 0
    %105 = vmatpush1.bf16.msra.mxu0 0
    %106 = vmatprep.subr.bf16.mxu0 0
    %107 = vmatpush1.bf16.msra.mxu0 0
    %108 = vmatprep.subr.bf16.mxu0 0
    %109 = vmatpush1.bf16.msra.mxu0 0
    %110 = vmatprep.subr.bf16.mxu0 0
    %111 = vmatpush1.bf16.msra.mxu0 0
    %112 = vmatprep.subr.bf16.mxu0 0
    %113 = vmatpush1.bf16.msra.mxu0 0
    %114 = vmatprep.subr.bf16.mxu0 0
    %115 = vmatpush1.bf16.msra.mxu0 0
    %116 = vmatprep.subr.bf16.mxu0 0
    %117 = vmatpush1.bf16.msra.mxu0 0
    %118 = vmatprep.subr.bf16.mxu0 0
    %119 = vmatpush1.bf16.msra.mxu0 0
    %120 = vmatprep.mubr.bf16.mxu0 0
    %121 = vmatmul.mubr.bf16.gmra.mrb[0].mxu0 %v34
    %v122 = vpop.f32.mrb[0].mxu0
    %v123 = vadd.f32 0.0, %v122
    %v124 = vpop.f32.mrb[0].mxu0
    %v125 = vpop.f32.mrb[0].mxu0
    %v126 = vpop.f32.mrb[0].mxu0
    %127 = vdwg.mxu0
    %v128 = vpack.c.bf16 %v123, %v123
    %s129 = scalar_lea.vmem [#allocation2], 4
    %130 = vst.msk [vmem:[%s129] sm:$0xf] %vm77, %v128
    %s131 = scalar_lea.vmem %s1, 16
    %v132 = vld [vmem:[%s131] sm:$0xf]
    %v133 = vld [vmem:[%s131 + $0x4] sm:$0xf]
    %v136 = vunpack.c.l.b16 %v132
    %v137 = vunpack.c.l.b16 %v133
    %v138 = vpack.c.b16 %v137, %v136
    %140 = vmatprep.subr.bf16.mxu0 0
    %141 = vmatpush1.bf16.msra.mxu0 %v138
    %142 = vmatprep.subr.bf16.mxu0 0
    %143 = vmatpush1.bf16.msra.mxu0 0
    %144 = vmatprep.subr.bf16.mxu0 0
    %145 = vmatpush1.bf16.msra.mxu0 0
    %146 = vmatprep.subr.bf16.mxu0 0
    %147 = vmatpush1.bf16.msra.mxu0 0
    %148 = vmatprep.subr.bf16.mxu0 0
    %149 = vmatpush1.bf16.msra.mxu0 0
    %150 = vmatprep.subr.bf16.mxu0 0
    %151 = vmatpush1.bf16.msra.mxu0 0
    %152 = vmatprep.subr.bf16.mxu0 0
    %153 = vmatpush1.bf16.msra.mxu0 0
    %154 = vmatprep.subr.bf16.mxu0 0
    %155 = vmatpush1.bf16.msra.mxu0 0
    %156 = vmatprep.subr.bf16.mxu0 0
    %157 = vmatpush1.bf16.msra.mxu0 0
    %158 = vmatprep.subr.bf16.mxu0 0
    %159 = vmatpush1.bf16.msra.mxu0 0
    %160 = vmatprep.subr.bf16.mxu0 0
    %161 = vmatpush1.bf16.msra.mxu0 0
    %162 = vmatprep.subr.bf16.mxu0 0
    %163 = vmatpush1.bf16.msra.mxu0 0
    %164 = vmatprep.subr.bf16.mxu0 0
    %165 = vmatpush1.bf16.msra.mxu0 0
    %166 = vmatprep.subr.bf16.mxu0 0
    %167 = vmatpush1.bf16.msra.mxu0 0
    %168 = vmatprep.subr.bf16.mxu0 0
    %169 = vmatpush1.bf16.msra.mxu0 0
    %170 = vmatprep.subr.bf16.mxu0 0
    %171 = vmatpush1.bf16.msra.mxu0 0
    %172 = vmatprep.mubr.bf16.mxu0 0
    %173 = vmatmul.mubr.bf16.gmra.mrb[0].mxu0 %v34
    %v174 = vpop.f32.mrb[0].mxu0
    %v175 = vadd.f32 0.0, %v174
    %v176 = vpop.f32.mrb[0].mxu0
    %v177 = vpop.f32.mrb[0].mxu0
    %v178 = vpop.f32.mrb[0].mxu0
    %179 = vdwg.mxu0
    %v180 = vpack.c.bf16 %v175, %v175
    %s181 = scalar_lea.vmem [#allocation2], 8
    %182 = vst.msk [vmem:[%s181] sm:$0xf] %vm77, %v180
    %s183 = scalar_lea.vmem %s1, 24
    %v184 = vld [vmem:[%s183] sm:$0xf]
    %v185 = vld [vmem:[%s183 + $0x4] sm:$0xf]
    %v188 = vunpack.c.l.b16 %v184
    %v189 = vunpack.c.l.b16 %v185
    %v190 = vpack.c.b16 %v189, %v188
    %192 = vmatprep.subr.bf16.mxu0 0
    %193 = vmatpush1.bf16.msra.mxu0 %v190
    %194 = vmatprep.subr.bf16.mxu0 0
    %195 = vmatpush1.bf16.msra.mxu0 0
    %196 = vmatprep.subr.bf16.mxu0 0
    %197 = vmatpush1.bf16.msra.mxu0 0
    %198 = vmatprep.subr.bf16.mxu0 0
    %199 = vmatpush1.bf16.msra.mxu0 0
    %200 = vmatprep.subr.bf16.mxu0 0
    %201 = vmatpush1.bf16.msra.mxu0 0
    %202 = vmatprep.subr.bf16.mxu0 0
    %203 = vmatpush1.bf16.msra.mxu0 0
    %204 = vmatprep.subr.bf16.mxu0 0
    %205 = vmatpush1.bf16.msra.mxu0 0
    %206 = vmatprep.subr.bf16.mxu0 0
    %207 = vmatpush1.bf16.msra.mxu0 0
    %208 = vmatprep.subr.bf16.mxu0 0
    %209 = vmatpush1.bf16.msra.mxu0 0
    %210 = vmatprep.subr.bf16.mxu0 0
    %211 = vmatpush1.bf16.msra.mxu0 0
    %212 = vmatprep.subr.bf16.mxu0 0
    %213 = vmatpush1.bf16.msra.mxu0 0
    %214 = vmatprep.subr.bf16.mxu0 0
    %215 = vmatpush1.bf16.msra.mxu0 0
    %216 = vmatprep.subr.bf16.mxu0 0
    %217 = vmatpush1.bf16.msra.mxu0 0
    %218 = vmatprep.subr.bf16.mxu0 0
    %219 = vmatpush1.bf16.msra.mxu0 0
    %220 = vmatprep.subr.bf16.mxu0 0
    %221 = vmatpush1.bf16.msra.mxu0 0
    %222 = vmatprep.subr.bf16.mxu0 0
    %223 = vmatpush1.bf16.msra.mxu0 0
    %224 = vmatprep.mubr.bf16.mxu0 0
    %225 = vmatmul.mubr.bf16.gmra.mrb[0].mxu0 %v34
    %v226 = vpop.f32.mrb[0].mxu0
    %v227 = vadd.f32 0.0, %v226
    %v228 = vpop.f32.mrb[0].mxu0
    %v229 = vpop.f32.mrb[0].mxu0
    %v230 = vpop.f32.mrb[0].mxu0
    %231 = vdwg.mxu0
    %v232 = vpack.c.bf16 %v227, %v227
    %s233 = scalar_lea.vmem [#allocation2], 12
    %234 = vst.msk [vmem:[%s233] sm:$0xf] %vm77, %v232
    %v235 = vld [vmem:[%s2] sm:$0xff]
    %v236 = vld [vmem:[%s2 + $0x8] sm:$0xff]
    %v238 = vsel %vm32, %v22, 0
    %240 = vmatprep.subr.mxu0 0.0
    %241 = vmatpush1.msra.mxu0 %v235
    %242 = vmatprep.subr.mxu0 0.0
    %243 = vmatpush1.msra.mxu0 %v236
    %244 = vmatprep.subr.mxu0 0.0
    %245 = vmatpush1.msra.mxu0 0.0
    %246 = vmatprep.subr.mxu0 0.0
    %247 = vmatpush1.msra.mxu0 0.0
    %248 = vmatprep.subr.mxu0 0.0
    %249 = vmatpush1.msra.mxu0 0.0
    %250 = vmatprep.subr.mxu0 0.0
    %251 = vmatpush1.msra.mxu0 0.0
    %252 = vmatprep.subr.mxu0 0.0
    %253 = vmatpush1.msra.mxu0 0.0
    %254 = vmatprep.subr.mxu0 0.0
    %255 = vmatpush1.msra.mxu0 0.0
    %256 = vmatprep.subr.mxu0 0.0
    %257 = vmatpush1.msra.mxu0 0.0
    %258 = vmatprep.subr.mxu0 0.0
    %259 = vmatpush1.msra.mxu0 0.0
    %260 = vmatprep.subr.mxu0 0.0
    %261 = vmatpush1.msra.mxu0 0.0
    %262 = vmatprep.subr.mxu0 0.0
    %263 = vmatpush1.msra.mxu0 0.0
    %264 = vmatprep.subr.mxu0 0.0
    %265 = vmatpush1.msra.mxu0 0.0
    %266 = vmatprep.subr.mxu0 0.0
    %267 = vmatpush1.msra.mxu0 0.0
    %268 = vmatprep.subr.mxu0 0.0
    %269 = vmatpush1.msra.mxu0 0.0
    %270 = vmatprep.subr.mxu0 0.0
    %271 = vmatpush1.msra.mxu0 0.0
    %272 = vmatprep.subr.mxu0 0.0
    %273 = vmatpush1.msra.mxu0 0.0
    %274 = vmatprep.subr.mxu0 0.0
    %275 = vmatpush1.msra.mxu0 0.0
    %276 = vmatprep.subr.mxu0 0.0
    %277 = vmatpush1.msra.mxu0 0.0
    %278 = vmatprep.subr.mxu0 0.0
    %279 = vmatpush1.msra.mxu0 0.0
    %280 = vmatprep.subr.mxu0 0.0
    %281 = vmatpush1.msra.mxu0 0.0
    %282 = vmatprep.subr.mxu0 0.0
    %283 = vmatpush1.msra.mxu0 0.0
    %284 = vmatprep.subr.mxu0 0.0
    %285 = vmatpush1.msra.mxu0 0.0
    %286 = vmatprep.subr.mxu0 0.0
    %287 = vmatpush1.msra.mxu0 0.0
    %288 = vmatprep.subr.mxu0 0.0
    %289 = vmatpush1.msra.mxu0 0.0
    %290 = vmatprep.subr.mxu0 0.0
    %291 = vmatpush1.msra.mxu0 0.0
    %292 = vmatprep.subr.mxu0 0.0
    %293 = vmatpush1.msra.mxu0 0.0
    %294 = vmatprep.subr.mxu0 0.0
    %295 = vmatpush1.msra.mxu0 0.0
    %296 = vmatprep.subr.mxu0 0.0
    %297 = vmatpush1.msra.mxu0 0.0
    %298 = vmatprep.subr.mxu0 0.0
    %299 = vmatpush1.msra.mxu0 0.0
    %300 = vmatprep.subr.mxu0 0.0
    %301 = vmatpush1.msra.mxu0 0.0
    %302 = vmatprep.subr.mxu0 0.0
    %303 = vmatpush1.msra.mxu0 0.0
    %304 = vmatprep.mubr.f32.mxu0 0.0
    %305 = vmatmul.mubr.f32.gmra.mrb[0].mxu0 %v238
    %v306 = vpop.f32.mrb[0].mxu0
    %v307 = vadd.f32 0.0, %v306
    %v308 = vpop.f32.mrb[0].mxu0
    %309 = vdwg.mxu0
    %vm310 = vcmask 31744
    %311 = vst.msk [vmem:[%s5] sm:$0xff] %vm310, %v307
    %v312 = vld [vmem:[%s3] sm:$0xff]
    %v313 = vld [vmem:[%s3 + $0x8] sm:$0xff]
    %314 = vmatprep.subr.mxu0 0.0
    %315 = vmatpush1.msra.mxu0 %v312
    %316 = vmatprep.subr.mxu0 0.0
    %317 = vmatpush1.msra.mxu0 %v313
    %318 = vmatprep.subr.mxu0 0.0
    %319 = vmatpush1.msra.mxu0 0.0
    %320 = vmatprep.subr.mxu0 0.0
    %321 = vmatpush1.msra.mxu0 0.0
    %322 = vmatprep.subr.mxu0 0.0
    %323 = vmatpush1.msra.mxu0 0.0
    %324 = vmatprep.subr.mxu0 0.0
    %325 = vmatpush1.msra.mxu0 0.0
    %326 = vmatprep.subr.mxu0 0.0
    %327 = vmatpush1.msra.mxu0 0.0
    %328 = vmatprep.subr.mxu0 0.0
    %329 = vmatpush1.msra.mxu0 0.0
    %330 = vmatprep.subr.mxu0 0.0
    %331 = vmatpush1.msra.mxu0 0.0
    %332 = vmatprep.subr.mxu0 0.0
    %333 = vmatpush1.msra.mxu0 0.0
    %334 = vmatprep.subr.mxu0 0.0
    %335 = vmatpush1.msra.mxu0 0.0
    %336 = vmatprep.subr.mxu0 0.0
    %337 = vmatpush1.msra.mxu0 0.0
    %338 = vmatprep.subr.mxu0 0.0
    %339 = vmatpush1.msra.mxu0 0.0
    %340 = vmatprep.subr.mxu0 0.0
    %341 = vmatpush1.msra.mxu0 0.0
    %342 = vmatprep.subr.mxu0 0.0
    %343 = vmatpush1.msra.mxu0 0.0
    %344 = vmatprep.subr.mxu0 0.0
    %345 = vmatpush1.msra.mxu0 0.0
    %346 = vmatprep.subr.mxu0 0.0
    %347 = vmatpush1.msra.mxu0 0.0
    %348 = vmatprep.subr.mxu0 0.0
    %349 = vmatpush1.msra.mxu0 0.0
    %350 = vmatprep.subr.mxu0 0.0
    %351 = vmatpush1.msra.mxu0 0.0
    %352 = vmatprep.subr.mxu0 0.0
    %353 = vmatpush1.msra.mxu0 0.0
    %354 = vmatprep.subr.mxu0 0.0
    %355 = vmatpush1.msra.mxu0 0.0
    %356 = vmatprep.subr.mxu0 0.0
    %357 = vmatpush1.msra.mxu0 0.0
    %358 = vmatprep.subr.mxu0 0.0
    %359 = vmatpush1.msra.mxu0 0.0
    %360 = vmatprep.subr.mxu0 0.0
    %361 = vmatpush1.msra.mxu0 0.0
    %362 = vmatprep.subr.mxu0 0.0
    %363 = vmatpush1.msra.mxu0 0.0
    %364 = vmatprep.subr.mxu0 0.0
    %365 = vmatpush1.msra.mxu0 0.0
    %366 = vmatprep.subr.mxu0 0.0
    %367 = vmatpush1.msra.mxu0 0.0
    %368 = vmatprep.subr.mxu0 0.0
    %369 = vmatpush1.msra.mxu0 0.0
    %370 = vmatprep.subr.mxu0 0.0
    %371 = vmatpush1.msra.mxu0 0.0
    %372 = vmatprep.subr.mxu0 0.0
    %373 = vmatpush1.msra.mxu0 0.0
    %374 = vmatprep.subr.mxu0 0.0
    %375 = vmatpush1.msra.mxu0 0.0
    %376 = vmatprep.subr.mxu0 0.0
    %377 = vmatpush1.msra.mxu0 0.0
    %378 = vmatprep.mubr.f32.mxu0 0.0
    %379 = vmatmul.mubr.f32.gmra.mrb[0].mxu0 %v238
    %v380 = vpop.f32.mrb[0].mxu0
    %v381 = vadd.f32 0.0, %v380
    %v382 = vpop.f32.mrb[0].mxu0
    %383 = vdwg.mxu0
    %384 = vst.msk [vmem:[%s6] sm:$0xff] %vm310, %v381
    // Predicated region
    $region18: #{tpu_custom_call.1} parent=1 // pred_check
      _
    $region19: #{tpu_custom_call.1} parent=1 // pred_check_branch
      %386 = sbr.rel (0) target = $region21
    $region20: #{tpu_custom_call.1} parent=1 // pred_region
      %s388 = ssub.s32 256, 256
      %389 = vsyncadd [#allocation3], %s388
      %s390 = sshll.u32 [#allocation2], 4
      %s391 = int_to_ptr.vmem [resolvable:$true] %s390
      %396 = dma.vmem_to_hbm [thread:$0]  %s391, 256, %s4, [#allocation3], 64, 64, 4
    $region21: #{tpu_custom_call.1} parent=1 // pred_fallthru
      _
    // Predicated region
    $region22: #{tpu_custom_call.1} parent=1 // pred_check
      _
    $region23: #{tpu_custom_call.1} parent=1 // pred_check_branch
      %398 = sbr.rel (0) target = $region25
    $region24: #{tpu_custom_call.1} parent=1 // pred_region
      _
    $region25: #{tpu_custom_call.1} parent=1 // pred_fallthru
      _
    // Predicated region
    $region26: #{tpu_custom_call.1} parent=1 // pred_check
      _
    $region27: #{tpu_custom_call.1} parent=1 // pred_check_branch
      %400 = sbr.rel (0) target = $region29
    $region28: #{tpu_custom_call.1} parent=1 // pred_region
      _
    $region29: #{tpu_custom_call.1} parent=1 // pred_fallthru
      _
    // Predicated region
    $region30: #{tpu_custom_call.1} parent=1 // pred_check
      _
    $region31: #{tpu_custom_call.1} parent=1 // pred_check_branch
      %402 = sbr.rel (0) target = $region33
    $region32: #{tpu_custom_call.1} parent=1 // pred_region
      %403 = dma.done [#allocation3], 256
    $region33: #{tpu_custom_call.1} parent=1 // pred_fallthru
      _
    // Predicated region
    $region34: #{tpu_custom_call.1} parent=1 // pred_check
      _
    $region35: #{tpu_custom_call.1} parent=1 // pred_check_branch
      %405 = sbr.rel (0) target = $region37
    $region36: #{tpu_custom_call.1} parent=1 // pred_region
      _
    $region37: #{tpu_custom_call.1} parent=1 // pred_fallthru
      _
    // Predicated region
    $region38: #{tpu_custom_call.1} parent=1 // pred_check
      _
    $region39: #{tpu_custom_call.1} parent=1 // pred_check_branch
      %407 = sbr.rel (0) target = $region41
    $region40: #{tpu_custom_call.1} parent=1 // pred_region
      _
    $region41: #{tpu_custom_call.1} parent=1 // pred_fallthru
      _
    %408 = vsyncpa [#allocation3], 1

</llo_original>
